<compile_context>
chip_gen: v7x
topology: tpu7x:2x2x1
jax: 0.10.0
libtpu: 0.0.40
codegen_flags: <defaults>
</compile_context>

<pallas_src>
import functools

import jax
import jax.numpy as jnp
from jax.experimental import pallas as pl
from jax.experimental.pallas import tpu as pltpu

NUM_CLASSES = 19
IGNORE_LABEL = 250
ALPHA = 0.25


# ----------------------------------------------------------------------------
# Plain-JAX pieces: module-parity forward on a precomputed encoding (tiny
# inputs -> plain XLA, per perf review) and the unique_encode reference.
# ----------------------------------------------------------------------------
def unique_encode(cls_targets, num_classes=NUM_CLASSES, ignore_label=IGNORE_LABEL):
    """Reference for SemanticEncodingLoss.unique_encode (pure JAX)."""
    b = cls_targets.shape[0]
    lbl = cls_targets.reshape(b, -1)
    valid = (lbl >= 0) & (lbl != ignore_label)
    classes = jnp.arange(num_classes, dtype=lbl.dtype)
    present = jnp.any((lbl[:, :, None] == classes[None, None, :]) & valid[:, :, None],
                      axis=1)
    return present.astype(jnp.float32)


def semantic_encoding_loss(predicts, enc_cls_target, *, alpha=ALPHA, size_average=True):
    """Module-parity forward().  The inputs are only (B, num_classes) ~ a few
    hundred bytes, so per the performance review this stays in plain XLA; the
    Pallas kernel below does the HBM-heavy fused unique_encode + forward."""
    x = predicts.astype(jnp.float32)
    y = enc_cls_target.astype(jnp.float32)
    per = jnp.maximum(x, 0.0) - x * y + jnp.log1p(jnp.exp(-jnp.abs(x)))
    loss = jnp.mean(per) if size_average else jnp.sum(per)
    return alpha * loss


# ----------------------------------------------------------------------------
# Fused unique_encode + forward Pallas kernel (the performance lever).
# ----------------------------------------------------------------------------
def _fused_se_loss_kernel(lbl_ref, predT_ref, o_ref, acc_ref, presT_ref, *,
                          alpha, num_classes, ignore_label, inv_n):
    bi = pl.program_id(0)            # batch element
    ti = pl.program_id(1)            # row tile within the image
    num_t = pl.num_programs(1)

    rt, _ = lbl_ref.shape            # (rows_tile, W), rows_tile >= 8
    n_cls, n_b = presT_ref.shape     # (num_classes, batch)

    @pl.when(jnp.logical_and(bi == 0, ti == 0))
    def _init_all():
        presT_ref[...] = jnp.zeros_like(presT_ref)

    @pl.when(ti == 0)
    def _init_batch():
        acc_ref[...] = jnp.zeros_like(acc_ref)

    def encode_bits(chunk):
        # chunk: (8, W) int32 labels -> int32 class bitmask per element.
        valid = (chunk >= 0) & (chunk < num_classes)
        if ignore_label < num_classes:          # static: usually subsumed by < num_classes
            valid &= chunk != ignore_label
        # `& 31` keeps the shift amount defined for ignore / negative / OOR labels;
        # the select zeroes them out.  Pure VPU, no cross-lane work.
        return jnp.where(valid, jnp.left_shift(jnp.int32(1), chunk & 31), 0)

    # OR-accumulate 8-row groups of the tile into the (8, W) bitmask scratch.
    # When rt % 8 != 0 the last window overlaps the previous one (OR is
    # idempotent), so no masked / partial stores are ever needed.
    n_groups = -(-rt // 8)
    for g in range(n_groups):
        start = min(g * 8, rt - 8)
        chunk = lbl_ref[pl.ds(start, 8), :]
        acc_ref[...] = acc_ref[...] | encode_bits(chunk)

    # ---- per-image finalize: fold + decode bitmask -> presence column ----
    @pl.when(ti == num_t - 1)
    def _finish_batch():
        accv = acc_ref[...]                              # (8, W) int32
        m = accv[0:1, :]
        for r in range(1, 8):
            m = m | accv[r:r + 1, :]                     # (1, W) folded bitmask
        cls = jax.lax.broadcasted_iota(jnp.int32, (num_classes, 1), 0)
        hits = jnp.right_shift(m, cls) & 1               # (C, W)
        presence_col = jnp.max(hits, axis=1, keepdims=True).astype(jnp.float32)  # (C, 1)
        lane = jax.lax.broadcasted_iota(jnp.int32, (n_cls, n_b), 1)
        presT_ref[...] = jnp.where(lane == bi, presence_col, presT_ref[...])

        # ---- global finalize: BCE-with-logits + mean, scalar via SMEM ----
        @pl.when(bi == pl.num_programs(0) - 1)
        def _finish_all():
            x = predT_ref[...].astype(jnp.float32)       # (C, B)
            y = presT_ref[...]
            per = jnp.maximum(x, 0.0) - x * y + jnp.log1p(jnp.exp(-jnp.abs(x)))
            o_ref[0] = alpha * jnp.sum(per) * inv_n


def _pick_row_tile(h, w, target_bytes=1 << 20, row_cap=512):
    """Largest multiple-of-8 divisor of h giving a ~target_bytes int32 tile."""
    if h % 8 != 0:
        return h
    target = max(8, min(row_cap, (target_bytes // 4) // max(w, 1)))
    target = min(h, (target // 8) * 8)
    best = 8
    for r in range(8, target + 1, 8):
        if h % r == 0:
            best = r
    return best


def fused_semantic_encoding_loss(predicts, cls_targets, *, alpha=ALPHA,
                                 num_classes=NUM_CLASSES,
                                 ignore_label=IGNORE_LABEL,
                                 size_average=True,
                                 block_rows=None):
    """unique_encode + forward fused in one Pallas kernel.

    The (B, H, W) int32 label map is streamed once as sublane-dense
    (rows_tile, W) blocks over a sequential (batch, row_tile) grid; each tile
    is turned into per-element class bitmasks (pure VPU) and OR-folded into an
    (8, W) VMEM accumulator.  The 19-way decode runs once per image, the BCE +
    mean once per call, and the scalar loss leaves through SMEM.
    """
    b, c = predicts.shape
    bt, h, w = cls_targets.shape
    assert bt == b
    assert num_classes <= 32  # single int32 bitmask word
    # TODO(synk): >32 classes would need a second bitmask word per element.

    if h < 8:
        # Pathological tiny image: not worth a custom tiling, fall back to XLA.
        return semantic_encoding_loss(
            predicts, unique_encode(cls_targets, num_classes, ignore_label),
            alpha=alpha, size_average=size_average)

    labels = (cls_targets if cls_targets.dtype == jnp.int32
              else cls_targets.astype(jnp.int32))
    # TODO(synk): stream int8 labels directly (4x less HBM) if a narrow copy
    # already exists upstream; a one-off wrapper cast would cost more than it saves.

    if h % 8 != 0:
        rt, num_t = h, 1     # single (overlapping-window) pass per image
    else:
        rt = block_rows if block_rows is not None else _pick_row_tile(h, w)
        assert rt % 8 == 0 and h % rt == 0, (rt, h)
        num_t = h // rt

    # (C, B) logits: tiny transpose so the per-image presence lands lane-wise.
    predT = jnp.transpose(predicts)
    n_elems = float(b * c) if size_average else 1.0

    kernel = functools.partial(_fused_se_loss_kernel, alpha=float(alpha),
                               num_classes=num_classes,
                               ignore_label=ignore_label,
                               inv_n=1.0 / n_elems)

    out = pl.pallas_call(
        kernel,
        out_shape=jax.ShapeDtypeStruct((1,), jnp.float32),
        grid_spec=pltpu.PrefetchScalarGridSpec(
            num_scalar_prefetch=0,
            grid=(b, num_t),
            in_specs=[
                pl.BlockSpec((None, rt, w), lambda bi, ti: (bi, ti, 0)),  # label rows
                pl.BlockSpec((c, b), lambda bi, ti: (0, 0)),              # logits^T, resident
            ],
            out_specs=pl.BlockSpec(memory_space=pltpu.MemorySpace.SMEM),
            scratch_shapes=[
                pltpu.VMEM((8, w), jnp.int32),    # per-image class-bitmask accumulator
                pltpu.VMEM((c, b), jnp.float32),  # per-batch presence (class-major)
            ],
        ),
        # Both axes must stay sequential: the shared scratches and the final
        # SMEM write assume an ordered grid.
        # TODO(synk): v7x 2-TC split -> leading 'parallel' axis with per-core
        # partial presence and a tiny combine after the pallas_call.
        compiler_params=pltpu.CompilerParams(
            dimension_semantics=("arbitrary", "arbitrary")),
    )(labels, predT)
    return out[0]


if __name__ == "__main__":
    key = jax.random.PRNGKey(0)
    k1, k2, k3, k4 = jax.random.split(key, 4)

    # Case 1: batch=2, 16x16 labels; block_rows=8 -> grid (2, 2) exercises the
    # multi-tile bitmask accumulation and the per-image / global finalize.
    b1, h1, w1 = 2, 16, 16
    cls1 = jax.random.randint(k1, (b1, h1, w1), 0, NUM_CLASSES)
    cls1 = cls1.at[:, 0, 0].set(IGNORE_LABEL)
    pred1 = jax.random.normal(k2, (b1, NUM_CLASSES), dtype=jnp.float32)

    ref1 = semantic_encoding_loss(pred1, unique_encode(cls1))
    out1 = fused_semantic_encoding_loss(pred1, cls1, block_rows=8)
    out1_auto = fused_semantic_encoding_loss(pred1, cls1)   # auto row tile

    # Case 2: H not a multiple of 8 (13x20) with ignore / negative /
    # out-of-range labels -> exercises the overlapping last row-group.
    b2, h2, w2 = 2, 13, 20
    cls2 = jax.random.randint(k3, (b2, h2, w2), 0, NUM_CLASSES)
    cls2 = cls2.at[0, 1, 1].set(IGNORE_LABEL)
    cls2 = cls2.at[0, 2, 3].set(-1)
    cls2 = cls2.at[1, 4, 5].set(100)        # >= num_classes -> treated absent
    pred2 = jax.random.normal(k4, (b2, NUM_CLASSES), dtype=jnp.float32)

    ref2 = semantic_encoding_loss(pred2, unique_encode(cls2))
    out2 = fused_semantic_encoding_loss(pred2, cls2)

    out1, out1_auto, out2, ref1, ref2 = jax.block_until_ready(
        (out1, out1_auto, out2, ref1, ref2))

    assert jnp.allclose(out1, ref1, rtol=1e-5, atol=1e-6), (out1, ref1)
    assert jnp.allclose(out1_auto, ref1, rtol=1e-5, atol=1e-6), (out1_auto, ref1)
    assert jnp.allclose(out2, ref2, rtol=1e-5, atol=1e-6), (out2, ref2)

    print("KERNEL_OK")
</pallas_src>

<mosaic_0001>
module attributes {stable_mosaic.version = 11 : i64} {
  func.func @_fused_se_loss_kernel(%arg0: i32, %arg1: i32, %arg2: memref<1x8x16xi32, #tpu.memory_space<vmem>>, %arg3: memref<19x2xf32, #tpu.memory_space<vmem>>, %arg4: memref<1xf32, #tpu.memory_space<smem>>, %arg5: memref<8x16xi32, #tpu.memory_space<vmem>>, %arg6: memref<19x2xf32, #tpu.memory_space<vmem>>) attributes {dimension_semantics = [#tpu.dimension_semantics<arbitrary>, #tpu.dimension_semantics<arbitrary>], iteration_bounds = array<i64: 2, 2>, scalar_prefetch = 0 : i64, scratch_operands = 2 : i64, tpu.core_type = #tpu.core_type<tc>, window_params = [{transform_indices = @transform_0, window_bounds = array<i64: 1, 8, 16>}, {pipeline_mode = #tpu.pipeline_mode<synchronous>, transform_indices = @transform_1, window_bounds = array<i64: 19, 2>}, {transform_indices = @transform_2, window_bounds = array<i64: 1>}]} {
    %c0_i32 = arith.constant 0 : i32
    %0 = arith.cmpi eq, %arg0, %c0_i32 : i32
    %c0_i32_0 = arith.constant 0 : i32
    %1 = arith.cmpi eq, %arg1, %c0_i32_0 : i32
    %2 = arith.andi %0, %1 : i1
    %3 = arith.extui %2 : i1 to i32
    %c0_i32_1 = arith.constant 0 : i32
    %4 = arith.cmpi ne, %3, %c0_i32_1 : i32
    scf.if %4 {
      %cst = arith.constant 0.000000e+00 : f32
      %27 = vector.broadcast %cst : f32 to vector<19x2xf32>
      %c0_14 = arith.constant 0 : index
      %c0_15 = arith.constant 0 : index
      %28 = vector.load %arg6[%c0_14, %c0_15] : memref<19x2xf32, #tpu.memory_space<vmem>>, vector<19x2xf32>
      tpu.vector_store %arg6[%c0_14, %c0_15], %27 {strides = array<i32>} : memref<19x2xf32, #tpu.memory_space<vmem>>, vector<19x2xf32>,
    } else {
    }
    %c0_i32_2 = arith.constant 0 : i32
    %5 = arith.cmpi eq, %arg1, %c0_i32_2 : i32
    %6 = arith.extui %5 : i1 to i32
    %c0_i32_3 = arith.constant 0 : i32
    %7 = arith.cmpi ne, %6, %c0_i32_3 : i32
    scf.if %7 {
      %c0_i32_14 = arith.constant 0 : i32
      %27 = vector.broadcast %c0_i32_14 : i32 to vector<8x16xi32>
      %c0_15 = arith.constant 0 : index
      %c0_16 = arith.constant 0 : index
      %28 = vector.load %arg5[%c0_15, %c0_16] : memref<8x16xi32, #tpu.memory_space<vmem>>, vector<8x16xi32>
      tpu.vector_store %arg5[%c0_15, %c0_16], %27 {strides = array<i32>} : memref<8x16xi32, #tpu.memory_space<vmem>>, vector<8x16xi32>,
    } else {
    }
    %c0 = arith.constant 0 : index
    %c0_4 = arith.constant 0 : index
    %c0_5 = arith.constant 0 : index
    %8 = vector.load %arg2[%c0, %c0_4, %c0_5] : memref<1x8x16xi32, #tpu.memory_space<vmem>>, vector<1x8x16xi32>
    %9 = vector.shape_cast %8 : vector<1x8x16xi32> to vector<8x16xi32>
    %c0_6 = arith.constant 0 : index
    %c0_7 = arith.constant 0 : index
    %10 = vector.load %arg5[%c0_6, %c0_7] : memref<8x16xi32, #tpu.memory_space<vmem>>, vector<8x16xi32>
    %c0_i32_8 = arith.constant 0 : i32
    %11 = vector.broadcast %c0_i32_8 : i32 to vector<8x16xi32>
    %12 = arith.cmpi sge, %9, %11 : vector<8x16xi32>
    %c19_i32 = arith.constant 19 : i32
    %13 = vector.broadcast %c19_i32 : i32 to vector<8x16xi32>
    %14 = arith.cmpi slt, %9, %13 : vector<8x16xi32>
    %15 = arith.andi %12, %14 : vector<8x16xi1>
    %c31_i32 = arith.constant 31 : i32
    %16 = vector.broadcast %c31_i32 : i32 to vector<8x16xi32>
    %17 = arith.andi %9, %16 : vector<8x16xi32>
    %c1_i32 = arith.constant 1 : i32
    %18 = vector.broadcast %c1_i32 : i32 to vector<8x16xi32>
    %19 = arith.shli %18, %17 : vector<8x16xi32>
    %c0_i32_9 = arith.constant 0 : i32
    %20 = vector.broadcast %c0_i32_9 : i32 to vector<8x16xi32>
    %21 = arith.select %15, %19, %20 : vector<8x16xi1>, vector<8x16xi32>
    %22 = arith.ori %10, %21 : vector<8x16xi32>
    %c0_10 = arith.constant 0 : index
    %c0_11 = arith.constant 0 : index
    %23 = vector.load %arg5[%c0_10, %c0_11] : memref<8x16xi32, #tpu.memory_space<vmem>>, vector<8x16xi32>
    tpu.vector_store %arg5[%c0_10, %c0_11], %22 {strides = array<i32>} : memref<8x16xi32, #tpu.memory_space<vmem>>, vector<8x16xi32>,
    %c1_i32_12 = arith.constant 1 : i32
    %24 = arith.cmpi eq, %arg1, %c1_i32_12 : i32
    %25 = arith.extui %24 : i1 to i32
    %c0_i32_13 = arith.constant 0 : i32
    %26 = arith.cmpi ne, %25, %c0_i32_13 : i32
    scf.if %26 {
      %c0_14 = arith.constant 0 : index
      %c0_15 = arith.constant 0 : index
      %27 = vector.load %arg5[%c0_14, %c0_15] : memref<8x16xi32, #tpu.memory_space<vmem>>, vector<8x16xi32>
      %28 = vector.extract_strided_slice %27 {offsets = [0, 0], sizes = [1, 16], strides = [1, 1]} : vector<8x16xi32> to vector<1x16xi32>
      %29 = vector.extract_strided_slice %27 {offsets = [1, 0], sizes = [1, 16], strides = [1, 1]} : vector<8x16xi32> to vector<1x16xi32>
      %30 = arith.ori %28, %29 : vector<1x16xi32>
      %31 = vector.extract_strided_slice %27 {offsets = [2, 0], sizes = [1, 16], strides = [1, 1]} : vector<8x16xi32> to vector<1x16xi32>
      %32 = arith.ori %30, %31 : vector<1x16xi32>
      %33 = vector.extract_strided_slice %27 {offsets = [3, 0], sizes = [1, 16], strides = [1, 1]} : vector<8x16xi32> to vector<1x16xi32>
      %34 = arith.ori %32, %33 : vector<1x16xi32>
      %35 = vector.extract_strided_slice %27 {offsets = [4, 0], sizes = [1, 16], strides = [1, 1]} : vector<8x16xi32> to vector<1x16xi32>
      %36 = arith.ori %34, %35 : vector<1x16xi32>
      %37 = vector.extract_strided_slice %27 {offsets = [5, 0], sizes = [1, 16], strides = [1, 1]} : vector<8x16xi32> to vector<1x16xi32>
      %38 = arith.ori %36, %37 : vector<1x16xi32>
      %39 = vector.extract_strided_slice %27 {offsets = [6, 0], sizes = [1, 16], strides = [1, 1]} : vector<8x16xi32> to vector<1x16xi32>
      %40 = arith.ori %38, %39 : vector<1x16xi32>
      %41 = vector.extract_strided_slice %27 {offsets = [7, 0], sizes = [1, 16], strides = [1, 1]} : vector<8x16xi32> to vector<1x16xi32>
      %42 = arith.ori %40, %41 : vector<1x16xi32>
      %43 = tpu.iota {dimensions = array<i32: 0>} : vector<19x1xi32>
      %44 = vector.broadcast %42 : vector<1x16xi32> to vector<19x16xi32>
      %45 = vector.broadcast %43 : vector<19x1xi32> to vector<19x16xi32>
      %46 = arith.shrsi %44, %45 : vector<19x16xi32>
      %c1_i32_16 = arith.constant 1 : i32
      %47 = vector.broadcast %c1_i32_16 : i32 to vector<19x16xi32>
      %48 = arith.andi %46, %47 : vector<19x16xi32>
      %cst = arith.constant dense<-2147483648> : vector<19xi32>
      %49 = vector.multi_reduction <maxsi>, %48, %cst [1] : vector<19x16xi32> to vector<19xi32>
      %50 = vector.shape_cast %49 : vector<19xi32> to vector<19x1xi32>
      %51 = arith.sitofp %50 : vector<19x1xi32> to vector<19x1xf32>
      %52 = tpu.iota {dimensions = array<i32: 1>} : vector<19x2xi32>
      %53 = vector.broadcast %arg0 : i32 to vector<19x2xi32>
      %54 = arith.cmpi eq, %52, %53 : vector<19x2xi32>
      %c0_17 = arith.constant 0 : index
      %c0_18 = arith.constant 0 : index
      %55 = vector.load %arg6[%c0_17, %c0_18] : memref<19x2xf32, #tpu.memory_space<vmem>>, vector<19x2xf32>
      %56 = vector.shape_cast %51 : vector<19x1xf32> to vector<19x1xf32>
      %57 = vector.broadcast %56 : vector<19x1xf32> to vector<19x2xf32>
      %58 = arith.select %54, %57, %55 : vector<19x2xi1>, vector<19x2xf32>
      %c0_19 = arith.constant 0 : index
      %c0_20 = arith.constant 0 : index
      %59 = vector.load %arg6[%c0_19, %c0_20] : memref<19x2xf32, #tpu.memory_space<vmem>>, vector<19x2xf32>
      tpu.vector_store %arg6[%c0_19, %c0_20], %58 {strides = array<i32>} : memref<19x2xf32, #tpu.memory_space<vmem>>, vector<19x2xf32>,
      %c1_i32_21 = arith.constant 1 : i32
      %60 = arith.cmpi eq, %arg0, %c1_i32_21 : i32
      %61 = arith.extui %60 : i1 to i32
      %c0_i32_22 = arith.constant 0 : i32
      %62 = arith.cmpi ne, %61, %c0_i32_22 : i32
      scf.if %62 {
        %c0_23 = arith.constant 0 : index
        %c0_24 = arith.constant 0 : index
        %63 = vector.load %arg3[%c0_23, %c0_24] : memref<19x2xf32, #tpu.memory_space<vmem>>, vector<19x2xf32>
        %c0_25 = arith.constant 0 : index
        %c0_26 = arith.constant 0 : index
        %64 = vector.load %arg6[%c0_25, %c0_26] : memref<19x2xf32, #tpu.memory_space<vmem>>, vector<19x2xf32>
        %cst_27 = arith.constant 0.000000e+00 : f32
        %65 = vector.broadcast %cst_27 : f32 to vector<19x2xf32>
        %66 = arith.maximumf %63, %65 : vector<19x2xf32>
        %67 = arith.mulf %63, %64 : vector<19x2xf32>
        %68 = arith.subf %66, %67 : vector<19x2xf32>
        %69 = math.absf %63 : vector<19x2xf32>
        %cst_28 = arith.constant 0.000000e+00 : f32
        %70 = vector.broadcast %cst_28 : f32 to vector<19x2xf32>
        %71 = arith.subf %70, %69 : vector<19x2xf32>
        %72 = math.exp %71 : vector<19x2xf32>
        %73 = math.log1p %72 : vector<19x2xf32>
        %74 = arith.addf %68, %73 : vector<19x2xf32>
        %75 = vector.shape_cast %74 : vector<19x2xf32> to vector<1x19x2xf32>
        %cst_29 = arith.constant dense<0.000000e+00> : vector<1xf32>
        %76 = vector.multi_reduction <add>, %75, %cst_29 [1, 2] : vector<1x19x2xf32> to vector<1xf32>
        %77 = vector.shape_cast %76 : vector<1xf32> to vector<1x1x1xf32>
        %78 = vector.extract %77[0, 0, 0] : f32 from vector<1x1x1xf32>
        %cst_30 = arith.constant 2.500000e-01 : f32
        %79 = arith.mulf %cst_30, %78 : f32
        %cst_31 = arith.constant 0.0263157897 : f32
        %80 = arith.mulf %79, %cst_31 : f32
        %c0_32 = arith.constant 0 : index
        %81 = memref.load %arg4[%c0_32] : memref<1xf32, #tpu.memory_space<smem>>
        memref.store %80, %arg4[%c0_32] : memref<1xf32, #tpu.memory_space<smem>>
      } else {
      }
    } else {
    }
    return
  }
  func.func @transform_0(%arg0: i32, %arg1: i32) -> (i32, i32, i32) {
    %c0_i32 = arith.constant 0 : i32
    %c0_i32_0 = arith.constant 0 : i32
    return %arg0, %arg1, %c0_i32 : i32, i32, i32
  }
  func.func @transform_1(%arg0: i32, %arg1: i32) -> (i32, i32) {
    %c0_i32 = arith.constant 0 : i32
    %c0_i32_0 = arith.constant 0 : i32
    %c0_i32_1 = arith.constant 0 : i32
    return %c0_i32, %c0_i32_0 : i32, i32
  }
  func.func @transform_2(%arg0: i32, %arg1: i32) -> i32 {
    %c0_i32 = arith.constant 0 : i32
    %c0_i32_0 = arith.constant 0 : i32
    return %c0_i32 : i32
  }
}

</mosaic_0001>

<llo_original>
// kernel: tpu_custom_call.1
$region0: #{tpu_custom_call.1}
  #allocation0 [shape = 'u32[]', space=smem, size = 0x4, offset = 0x4, fixed_abs, tag = 'smem constant byte address 0x4 - core index']
  #allocation1 [shape = 'u32[144,128]{1,0:T(1,128)}', space=vmem, size = 0x12000, scoped, tag = 'internal scratch']
  #allocation2 [shape = 's32[8,16]{1,0:T(8,128)}', space=vmem, size = 0x1000, scoped, tag = 'scratch operand']
  #allocation3 [shape = 'f32[19,2]{1,0:T(8,128)}', space=vmem, size = 0x3000, scoped, tag = 'scratch operand']
  %s0 = inlined_call_operand.hbm [shape: s32[2,16,16], index: 0, kind: input, shape index: {}]
  %s1 = inlined_call_operand.vmem [shape: f32[19,2], index: 1, kind: input, shape index: {}]
  %s2 = inlined_call_operand.hbm [shape: f32[1], index: 2, kind: output, shape index: {}]
  %s3 = sld [smem:[#allocation0]]
  $region61: #{tpu_custom_call.1} parent=0
    _
  %s5 = ssub.s32 1, %s3
  %s6 = scalar_select 0, %s5, %s3
  $region1: #{tpu_custom_call.1} parent=0
    #allocation4 [shape = 'u8[8192]{0}', space=vmem, size = 0x2000, scoped, tag = 'input window, operand 0']
    #allocation5 [shape = 's32[2]{0}', space=sflag, size = 0x8, scoped, tag = 'scoped memory for tpu_custom_call.1']
    #allocation6 [shape = 's32[2]{0}', space=sflag, size = 0x8, scoped, tag = 'scoped memory for tpu_custom_call.1']
    #allocation7 [shape = 'u8[512]{0}', space=smem, size = 0x200, scoped, tag = 'output window, operand 0, single buffered']
    %7 = vsyncpa [#allocation5], 0
    %s8 = scalar_lea.sflag [#allocation5], 1
    %9 = vsyncpa %s8, 0
    %10 = vsyncpa [#allocation6], 0
    loop: start=0, step=1, limit=6
    $region2: #{tpu_custom_call.1} parent=1 // loop_pre_header
      _
    $region3: #{tpu_custom_call.1} parent=1 // loop_header
      %s12 = sphi 0, %s16
      %p13 = scmp.ge.s32.totalorder %s12, 6
      %s19 = sphi 0, %s31
      %s20 = sphi 0, %s27
      %s21 = sphi 0, %s19
      %s22 = sphi 0, %s20
      %s23 = sphi 0, %s21
      %s24 = sphi 0, %s22
      %s36 = sphi 0, %s38
      %s39 = sphi 0, %s36
      %s40 = sphi 0, %s39
      %s56 = sphi 0, %s40
      %s60 = sphi 0, %s60
      %s62 = sphi 0, %s60
      %s63 = sphi 0, %s62
      %s77 = sphi 0, %s63
      %s81 = sphi 0, %s81
      %s83 = sphi 0, %s81
      %s84 = sphi 0, %s83
      %s98 = sphi 0, %s84
    $region4: #{tpu_custom_call.1} parent=1 // loop_header_branch
      %15 = sbr.rel (%p13) target = $region8
    $region5: #{tpu_custom_call.1} parent=1 // loop_body
      %s17 = ssub.s32 %s12, 1
      %s18 = ssub.s32 %s12, 2
      %s25 = sadd.s32 1, %s20
      %p26 = scmp.ge.s32.totalorder %s25, 2
      %s27 = scalar_select %p26, 0, %s25
      %s28 = sadd.s32 1, %s19
      %s29 = scalar_select %p26, %s28, %s19
      %p30 = scmp.ge.s32.totalorder %s29, 2
      %s31 = scalar_select %p30, 0, %s29
      %s32 = ssub.s32 %s19, %s31
      %s33 = ssub.s32 %s20, %s27
      %s34 = sor.u32 %s32, %s33
      %p35 = scmp.eq.s32.totalorder %s34, 0
      %s37 = sadd.s32 %s36, 1
      %s38 = scalar_select %p35, %s36, %s37
      %p41 = pneg %p35
      %p42 = scmp.eq.s32.totalorder %s12, 3
      %p43 = por %p41, %p42
      %p44 = scmp.ne.s32.totalorder %s36, %s39
      %p45 = scmp.eq.s32.totalorder %s12, 0
      %p46 = por %p44, %p45
      %p47 = scmp.ne.s32.totalorder %s36, %s39
      %p48 = scmp.eq.s32.totalorder %s17, 3
      %p49 = por %p47, %p48
      %p50 = scmp.ne.s32.totalorder %s39, %s40
      %p51 = scmp.eq.s32.totalorder %s17, 0
      %p52 = por %p50, %p51
      %p53 = scmp.ne.s32.totalorder %s39, %s40
      %p54 = scmp.eq.s32.totalorder %s18, 3
      %p55 = por %p53, %p54
      %p57 = scmp.ne.s32.totalorder %s40, %s56
      %p58 = scmp.eq.s32.totalorder %s18, 0
      %p59 = por %p57, %p58
      %s61 = sadd.s32 %s60, 1
      %p64 = scmp.eq.s32.totalorder %s12, 3
      %p65 = scmp.ne.s32.totalorder %s60, %s62
      %p66 = scmp.eq.s32.totalorder %s12, 0
      %p67 = por %p65, %p66
      %p68 = scmp.ne.s32.totalorder %s60, %s62
      %p69 = scmp.eq.s32.totalorder %s17, 3
      %p70 = por %p68, %p69
      %p71 = scmp.ne.s32.totalorder %s62, %s63
      %p72 = scmp.eq.s32.totalorder %s17, 0
      %p73 = por %p71, %p72
      %p74 = scmp.ne.s32.totalorder %s62, %s63
      %p75 = scmp.eq.s32.totalorder %s18, 3
      %p76 = por %p74, %p75
      %p78 = scmp.ne.s32.totalorder %s63, %s77
      %p79 = scmp.eq.s32.totalorder %s18, 0
      %p80 = por %p78, %p79
      %s82 = sadd.s32 %s81, 1
      %p85 = scmp.eq.s32.totalorder %s12, 3
      %p86 = scmp.ne.s32.totalorder %s81, %s83
      %p87 = scmp.eq.s32.totalorder %s12, 0
      %p88 = por %p86, %p87
      %p89 = scmp.ne.s32.totalorder %s81, %s83
      %p90 = scmp.eq.s32.totalorder %s17, 3
      %p91 = por %p89, %p90
      %p92 = scmp.ne.s32.totalorder %s83, %s84
      %p93 = scmp.eq.s32.totalorder %s17, 0
      %p94 = por %p92, %p93
      %p95 = scmp.ne.s32.totalorder %s83, %s84
      %p96 = scmp.eq.s32.totalorder %s18, 3
      %p97 = por %p95, %p96
      %p99 = scmp.ne.s32.totalorder %s84, %s98
      %p100 = scmp.eq.s32.totalorder %s18, 0
      %p101 = por %p99, %p100
      %p102 = scmp.le.s32.totalorder 1, %s12
      %p103 = scmp.lt.s32.totalorder %s12, 5
      %p104 = pnand %p102, %p103
      %p105 = pneg %p104
      // Predicated region
      $region9: #{tpu_custom_call.1} parent=5 // pred_check
        _
      $region10: #{tpu_custom_call.1} parent=5 // pred_check_branch
        %107 = sbr.rel (%p104) target = $region12
      $region11: #{tpu_custom_call.1} parent=5 // pred_region
        %s108 = ssub.s32 %s12, 1
        // Predicated region
        $region13: #{tpu_custom_call.1} parent=11 // pred_check
          %p109 = pneg %p73
        $region14: #{tpu_custom_call.1} parent=11 // pred_check_branch
          %111 = sbr.rel (%p109) target = $region16
        $region15: #{tpu_custom_call.1} parent=11 // pred_region
          _
        $region16: #{tpu_custom_call.1} parent=11 // pred_fallthru
          _
      $region12: #{tpu_custom_call.1} parent=5 // pred_fallthru
        _
      %p112 = scmp.lt.s32.totalorder %s12, 4
      // Predicated region
      $region17: #{tpu_custom_call.1} parent=5 // pred_check
        %p113 = pneg %p112
      $region18: #{tpu_custom_call.1} parent=5 // pred_check_branch
        %115 = sbr.rel (%p113) target = $region20
      $region19: #{tpu_custom_call.1} parent=5 // pred_region
        // Predicated region
        $region21: #{tpu_custom_call.1} parent=19 // pred_check
          %p116 = pneg %p46
        $region22: #{tpu_custom_call.1} parent=19 // pred_check_branch
          %118 = sbr.rel (%p116) target = $region24
        $region23: #{tpu_custom_call.1} parent=19 // pred_region
          %s119 = sand.u32 %s36, 1
          %s120 = scalar_lea.sflag [#allocation5], %s119
          %s121 = sand.u32 %s36, 1
          %s122 = smul.addr %s121, 8
          %s123 = scalar_lea.vmem [#allocation4], %s122
          %s125 = ssub.s32 128, 128
          %126 = vsyncadd %s120, %s125
          %s127 = smul.addr %s19, 2
          %s128 = sadd.s32 %s20, %s127
          %s129 = smul.addr %s128, 128
          %s130 = scalar_lea.hbm %s0, %s129
          %s132 = sshll.u32 %s123, 4
          %s133 = int_to_ptr.vmem [resolvable:$true] %s132
          %135 = dma.hbm_to_vmem [thread:$0]  %s130, 128, %s133, %s120
        $region24: #{tpu_custom_call.1} parent=19 // pred_fallthru
          _
      $region20: #{tpu_custom_call.1} parent=5 // pred_fallthru
        _
      %p136 = scmp.le.s32.totalorder 1, %s12
      %p137 = scmp.lt.s32.totalorder %s12, 5
      %p138 = pnand %p136, %p137
      %p139 = pneg %p138
      // Predicated region
      $region25: #{tpu_custom_call.1} parent=5 // pred_check
        _
      $region26: #{tpu_custom_call.1} parent=5 // pred_check_branch
        %141 = sbr.rel (%p138) target = $region28
      $region27: #{tpu_custom_call.1} parent=5 // pred_region
        %s142 = ssub.s32 %s12, 1
        %s143 = sand.u32 %s39, 1
        %s144 = scalar_lea.sflag [#allocation5], %s143
        %s145 = sand.u32 %s39, 1
        %s146 = smul.addr %s145, 8
        %s147 = scalar_lea.vmem [#allocation4], %s146
        // Predicated region
        $region29: #{tpu_custom_call.1} parent=27 // pred_check
          %p148 = pneg %p52
        $region30: #{tpu_custom_call.1} parent=27 // pred_check_branch
          %150 = sbr.rel (%p148) target = $region32
        $region31: #{tpu_custom_call.1} parent=27 // pred_region
          %151 = dma.done %s144, 128
        $region32: #{tpu_custom_call.1} parent=27 // pred_fallthru
          _
        %s152 = sand.u32 %s39, 1
        %s153 = scalar_lea.sflag [#allocation5], %s152
        %s154 = sand.u32 %s39, 1
        %s155 = smul.addr %s154, 8
        %s156 = scalar_lea.vmem [#allocation4], %s155
        %p157 = pneg %p52
        %p158 = pneg %p49
        %p159 = pneg %p73
        %p160 = pneg %p70
        %p161 = pneg %p94
        %p162 = pneg %p91
        %p163 = scmp.eq.s32.totalorder %s21, 0
        %p164 = scmp.eq.s32.totalorder %s22, 0
        %p165 = pnand %p163, %p164
        %p166 = pneg %p165
        // Predicated region
        $region33: #{tpu_custom_call.1} parent=27 // pred_check
          _
        $region34: #{tpu_custom_call.1} parent=27 // pred_check_branch
          %168 = sbr.rel (%p165) target = $region36
        $region35: #{tpu_custom_call.1} parent=27 // pred_region
          %vm169 = vcmask 15360
          %170 = vst.msk [vmem:[#allocation3] sm:$0xff] %vm169, 0.0
          %171 = vst.msk [vmem:[#allocation3 + $0x8] sm:$0xff] %vm169, 0.0
          %vm172 = vcmask 10240
          %173 = vst.msk [vmem:[#allocation3 + $0x10] sm:$0x7] %vm172, 0.0
        $region36: #{tpu_custom_call.1} parent=27 // pred_fallthru
          _
        // Predicated region
        $region37: #{tpu_custom_call.1} parent=27 // pred_check
          %p174 = pneg %p164
        $region38: #{tpu_custom_call.1} parent=27 // pred_check_branch
          %176 = sbr.rel (%p174) target = $region40
        $region39: #{tpu_custom_call.1} parent=27 // pred_region
          %vm177 = vcmask 130048
          %178 = vst.msk [vmem:[#allocation2] sm:$0xff] %vm177, 0
        $region40: #{tpu_custom_call.1} parent=27 // pred_fallthru
          _
        %v179 = vld [vmem:[%s147] sm:$0xff]
        %v180 = vld [vmem:[#allocation2] sm:$0xff]
        %vm181 = vcmp.ge.s32.totalorder %v179, 0
        %vm182 = vcmp.lt.s32.totalorder %v179, 19
        %vm183 = vmand %vm181, %vm182
        %v184 = vand.u32 %v179, 31
        %v185 = vshll.u32 1, %v184
        %v186 = vsel %vm183, %v185, 0
        %v187 = vor.u32 %v180, %v186
        %vm188 = vcmask 130048
        %189 = vst.msk [vmem:[#allocation2] sm:$0xff] %vm188, %v187
        %p190 = scmp.eq.s32.totalorder %s22, 1
        // Predicated region
        $region41: #{tpu_custom_call.1} parent=27 // pred_check
          %p191 = pneg %p190
        $region42: #{tpu_custom_call.1} parent=27 // pred_check_branch
          %193 = sbr.rel (%p191) target = $region44
        $region43: #{tpu_custom_call.1} parent=27 // pred_region
          %v194 = vld [vmem:[#allocation2] sm:$0xff]
          %v195 = vrot.slane %v194, 1
          %v196 = vor.u32 %v194, %v195
          %v197 = vrot.slane %v194, 2
          %v198 = vor.u32 %v196, %v197
          %v199 = vrot.slane %v194, 3
          %v200 = vor.u32 %v198, %v199
          %v201 = vrot.slane %v194, 4
          %v202 = vor.u32 %v200, %v201
          %v203 = vrot.slane %v194, 5
          %v204 = vor.u32 %v202, %v203
          %v205 = vrot.slane %v194, 6
          %v206 = vor.u32 %v204, %v205
          %v207 = vrot.slane %v194, 7
          %v208 = vor.u32 %v206, %v207
          %v209 = vlaneseq
          %v210 = vshrl.u32 %v209, 7
          %v211 = vadd.s32 %v210, 8
          %v212 = vadd.s32 %v210, 16
          %v213 = vlaneseq
          %v214 = vshrl.u32 %v213, 7
          %v215 = vsub.s32 0, %v214
          %v216 = vrot.slane %v208, %v215
          %v217 = vshra.s32 %v216, %v210
          %v218 = vshra.s32 %v216, %v211
          %v219 = vshra.s32 %v216, %v212
          %v220 = vand.u32 %v217, 1
          %v221 = vand.u32 %v218, 1
          %v222 = vand.u32 %v219, 1
          %v223 = vsel %vm188, %v220, 2147483648
          %v224 = vand.u32 %v223, 65535
          %v225 = vshra.s32 %v223, 16
          %v226 = vcvt.s32.f32 %v224
          %v227 = vcvt.s32.f32 %v225
          %228 = vmax.xlane.f32.xlu0 %v227
          %v229 = vpop.xlane.xlu0 %228
          %vm230 = vcmp.eq.f32.partialorder %v227, %v229
          %v231 = vsel %vm230, %v226, -inf
          %232 = vmax.xlane.f32.xlu0 %v231
          %v233 = vpop.xlane.xlu0 %232
          %v234 = vcvt.f32.s32 %v233
          %v235 = vcvt.f32.s32 %v229
          %v236 = vshll.u32 %v235, 16
          %v237 = vadd.s32 %v236, %v234
          %v238 = vsel %vm188, %v221, 2147483648
          %v239 = vand.u32 %v238, 65535
          %v240 = vshra.s32 %v238, 16
          %v241 = vcvt.s32.f32 %v239
          %v242 = vcvt.s32.f32 %v240
          %243 = vmax.xlane.f32.xlu0 %v242
          %v244 = vpop.xlane.xlu0 %243
          %vm245 = vcmp.eq.f32.partialorder %v242, %v244
          %v246 = vsel %vm245, %v241, -inf
          %247 = vmax.xlane.f32.xlu0 %v246
          %v248 = vpop.xlane.xlu0 %247
          %v249 = vcvt.f32.s32 %v248
          %v250 = vcvt.f32.s32 %v244
          %v251 = vshll.u32 %v250, 16
          %v252 = vadd.s32 %v251, %v249
          %vm253 = vcmask 124928
          %v254 = vsel %vm253, %v222, 2147483648
          %v255 = vand.u32 %v254, 65535
          %v256 = vshra.s32 %v254, 16
          %v257 = vcvt.s32.f32 %v255
          %v258 = vcvt.s32.f32 %v256
          %259 = vmax.xlane.f32.xlu0 %v258
          %v260 = vpop.xlane.xlu0 %259
          %vm261 = vcmp.eq.f32.partialorder %v258, %v260
          %v262 = vsel %vm261, %v257, -inf
          %263 = vmax.xlane.f32.xlu0 %v262
          %v264 = vpop.xlane.xlu0 %263
          %v265 = vcvt.f32.s32 %v264
          %v266 = vcvt.f32.s32 %v260
          %v267 = vshll.u32 %v266, 16
          %v268 = vadd.s32 %v267, %v265
          %v269 = vcvt.s32.f32 %v237
          %v270 = vcvt.s32.f32 %v252
          %v271 = vcvt.s32.f32 %v268
          %v272 = vlaneseq
          %v273 = vand.u32 %v272, 127
          %v274 = vstv %s21
          %vm275 = vcmp.eq.s32.totalorder %v273, %v274
          %v276 = vld [vmem:[#allocation3] sm:$0xff]
          %v277 = vld [vmem:[#allocation3 + $0x8] sm:$0xff]
          %v278 = vld [vmem:[#allocation3 + $0x10] sm:$0x7]
          %v279 = vsel %vm275, %v269, %v276
          %v280 = vsel %vm275, %v270, %v277
          %v281 = vsel %vm275, %v271, %v278
          %vm282 = vcmask 15360
          %283 = vst.msk [vmem:[#allocation3] sm:$0xff] %vm282, %v279
          %284 = vst.msk [vmem:[#allocation3 + $0x8] sm:$0xff] %vm282, %v280
          %vm285 = vcmask 10240
          %286 = vst.msk [vmem:[#allocation3 + $0x10] sm:$0x7] %vm285, %v281
          %p287 = scmp.eq.s32.totalorder %s21, 1
          // Predicated region
          $region45: #{tpu_custom_call.1} parent=43 // pred_check
            %p288 = pneg %p287
          $region46: #{tpu_custom_call.1} parent=43 // pred_check_branch
            %290 = sbr.rel (%p288) target = $region48
          $region47: #{tpu_custom_call.1} parent=43 // pred_region
            %v291 = vld [vmem:[%s1] sm:$0xff]
            %v292 = vld [vmem:[%s1 + $0x8] sm:$0xff]
            %v293 = vld [vmem:[%s1 + $0x10] sm:$0x7]
            %v294 = vld [vmem:[#allocation3] sm:$0xff]
            %v295 = vld [vmem:[#allocation3 + $0x8] sm:$0xff]
            %v296 = vld [vmem:[#allocation3 + $0x10] sm:$0x7]
            %v297 = vmax.f32 %v291, 0.0
            %v298 = vmax.f32 %v292, 0.0
            %v299 = vmax.f32 %v293, 0.0
            %v300 = vmul.f32 %v291, %v294
            %v301 = vmul.f32 %v292, %v295
            %v302 = vmul.f32 %v293, %v296
            %v303 = vsub.f32 %v297, %v300
            %v304 = vsub.f32 %v298, %v301
            %v305 = vsub.f32 %v299, %v302
            %v306 = vand.u32 2147483647, %v291
            %v307 = vand.u32 2147483647, %v292
            %v308 = vand.u32 2147483647, %v293
            %v309 = vsub.f32 0.0, %v306
            %v310 = vsub.f32 0.0, %v307
            %v311 = vsub.f32 0.0, %v308
            %v312 = vmul.f32 %v309, 1.442695
            %v313 = vpow.pop %v312
            %v314 = vmul.f32 %v310, 1.442695
            %v315 = vpow.pop %v314
            %v316 = vmul.f32 %v311, 1.442695
            %v317 = vpow.pop %v316
            %v318 = vadd.f32 %v313, 1.0
            %v319 = vlog2.pop %v318
            %v320 = vmul.f32 %v319, 0.6931472
            %v321 = vmul.f32 -0.5, %v313
            %v322 = vadd.f32 %v321, 1.0
            %v323 = vmul.f32 %v322, %v313
            %v324 = vand.u32 2147483647, %v313
            %vm325 = vcmp.lt.f32.partialorder %v324, 0.0004427343
            %v326 = vsel %vm325, %v323, %v320
            %v327 = vadd.f32 %v315, 1.0
            %v328 = vlog2.pop %v327
            %v329 = vmul.f32 %v328, 0.6931472
            %v330 = vmul.f32 -0.5, %v315
            %v331 = vadd.f32 %v330, 1.0
            %v332 = vmul.f32 %v331, %v315
            %v333 = vand.u32 2147483647, %v315
            %vm334 = vcmp.lt.f32.partialorder %v333, 0.0004427343
            %v335 = vsel %vm334, %v332, %v329
            %v336 = vadd.f32 %v317, 1.0
            %v337 = vlog2.pop %v336
            %v338 = vmul.f32 %v337, 0.6931472
            %v339 = vmul.f32 -0.5, %v317
            %v340 = vadd.f32 %v339, 1.0
            %v341 = vmul.f32 %v340, %v317
            %v342 = vand.u32 2147483647, %v317
            %vm343 = vcmp.lt.f32.partialorder %v342, 0.0004427343
            %v344 = vsel %vm343, %v341, %v338
            %v345 = vadd.f32 %v303, %v326
            %v346 = vadd.f32 %v304, %v335
            %v347 = vadd.f32 %v305, %v344
            %v348 = vsel %vm282, %v345, 0.0
            %v349 = vsel %vm282, %v346, 0.0
            %v350 = vadd.f32 %v348, %v349
            %v351 = vsel %vm285, %v347, 0.0
            %v352 = vadd.f32 %v350, %v351
            %353 = vadd.xlane.f32.xlu0 %v352
            %v354 = vpop.xlane.xlu0 %353
            %v355 = vrot.slane %v354, 4
            %v356 = vadd.f32 %v354, %v355
            %v357 = vrot.slane %v356, 2
            %v358 = vadd.f32 %v356, %v357
            %v359 = vrot.slane %v358, 1
            %v360 = vadd.f32 %v358, %v359
            %s361 = vtos %v360
            %s362 = smul.f32 %s361, 0.25
            %s363 = smul.f32 %s362, 0.02631579
            %s364 = scalar_lea.smem [#allocation7], 0
            %365 = sst [smem:[%s364]] %s363
          $region48: #{tpu_custom_call.1} parent=43 // pred_fallthru
            _
        $region44: #{tpu_custom_call.1} parent=27 // pred_fallthru
          _
        // Predicated region
        $region49: #{tpu_custom_call.1} parent=27 // pred_check
          %p366 = pneg %p91
        $region50: #{tpu_custom_call.1} parent=27 // pred_check_branch
          %368 = sbr.rel (%p366) target = $region52
        $region51: #{tpu_custom_call.1} parent=27 // pred_region
          %s370 = ssub.s32 16, 16
          %371 = vsyncadd [#allocation6], %s370
          %374 = dma.smem_to_hbm [#allocation7], 16, %s2, [#allocation6]
        $region52: #{tpu_custom_call.1} parent=27 // pred_fallthru
          _
        // Predicated region
        $region53: #{tpu_custom_call.1} parent=27 // pred_check
          %p375 = pneg %p91
        $region54: #{tpu_custom_call.1} parent=27 // pred_check_branch
          %377 = sbr.rel (%p375) target = $region56
        $region55: #{tpu_custom_call.1} parent=27 // pred_region
          %378 = dma.done [#allocation6], 16
        $region56: #{tpu_custom_call.1} parent=27 // pred_fallthru
          _
        %379 = sfence
      $region28: #{tpu_custom_call.1} parent=5 // pred_fallthru
        _
      %p380 = scmp.le.s32.totalorder 2, %s12
      // Predicated region
      $region57: #{tpu_custom_call.1} parent=5 // pred_check
        %p381 = pneg %p380
      $region58: #{tpu_custom_call.1} parent=5 // pred_check_branch
        %383 = sbr.rel (%p381) target = $region60
      $region59: #{tpu_custom_call.1} parent=5 // pred_region
        %s384 = ssub.s32 %s12, 2
      $region60: #{tpu_custom_call.1} parent=5 // pred_fallthru
        _
    $region6: #{tpu_custom_call.1} parent=1 // loop_footer
      %s16 = sadd.s32 1, %s12
    $region7: #{tpu_custom_call.1} parent=1 // loop_footer_branch
      %11 = sbr.rel target = $region3
    $region8: #{tpu_custom_call.1} parent=1 // loop_exit
      _
    %385 = vsyncpa [#allocation5], 1
    %s386 = scalar_lea.sflag [#allocation5], 1
    %387 = vsyncpa %s386, 1
    %388 = vsyncpa [#allocation6], 1
    %s389 = scalar_lea.sflag [#allocation6], 1
    %390 = vsyncpa %s389, 1

</llo_original>
